<compile_context>
chip_gen: v5e
topology: v5e:2x2
jax: 0.10.0
libtpu: 0.0.40
codegen_flags: <defaults>
</compile_context>

<pallas_src>
import functools

import jax
import jax.numpy as jnp
from jax.experimental import pallas as pl
from jax.experimental.pallas import tpu as pltpu


def _mha_kernel(x_ref, w_ref, b_ref, out_ref, wavg_ref=None, *,
                num_heads, seq_len, embed_dim, block_b):
    L, E, H, Bt = seq_len, embed_dim, num_heads, block_b
    Dh = E // H
    in_dtype = x_ref.dtype

    # Single fused conv-projection matmul (all 3 taps, all Bt batches) on the
    # MXU with f32 accumulation. The head_dim**-0.5 scaling is pre-folded into
    # the q columns of the weight/bias.
    qkv = (jnp.dot(x_ref[...], w_ref[...], preferred_element_type=jnp.float32)
           + b_ref[...])                                    # (Bt*L, 3E) f32

    # Keep MXU operands in the input dtype (bf16-friendly); f32 only as accum.
    q = qkv[:, 0:E].astype(in_dtype)
    k = qkv[:, E:2 * E].astype(in_dtype)
    v = qkv[:, 2 * E:3 * E].astype(in_dtype)

    inv_h = 1.0 / H
    for b in range(Bt):                    # static unroll (small batch block)
        r0 = b * L
        w_acc = jnp.zeros((L, L), jnp.float32)
        for h in range(H):                 # static unroll over heads
            c0 = h * Dh
            qh = q[r0:r0 + L, c0:c0 + Dh]
            kh = k[r0:r0 + L, c0:c0 + Dh]
            vh = v[r0:r0 + L, c0:c0 + Dh]
            s = jnp.dot(qh, kh.T, preferred_element_type=jnp.float32)  # (L, L)
            s = s - jnp.max(s, axis=-1, keepdims=True)                 # stable
            e = jnp.exp(s)
            p = e * pl.reciprocal(jnp.sum(e, axis=-1, keepdims=True),
                                  approx=True)                         # EUP
            oh = jnp.dot(p.astype(in_dtype), vh,
                         preferred_element_type=jnp.float32)           # (L, Dh)
            # Write each head's slab straight into the VMEM output tile
            # (no lane concat, no long head_outs liveness).
            out_ref[r0:r0 + L, c0:c0 + Dh] = oh.astype(out_ref.dtype)
            if wavg_ref is not None:
                w_acc = w_acc + p
        if wavg_ref is not None:
            wavg_ref[b] = (w_acc * inv_h).astype(wavg_ref.dtype)


def multihead_self_attention(query, in_proj_weight, in_proj_bias, num_heads,
                             *, need_weights=True, block_b=None,
                             key_padding_mask=None, attn_mask=None,
                             dropout_p=0.0, training=False):
    """Pallas forward of modellib.MultiheadAttention (self-attention path).

    query:           (L, B, E)  — PyTorch (seq, batch, embed) layout
    in_proj_weight:  (3E, E, 3) — conv1d projection weight
    in_proj_bias:    (3E,)
    Returns (attn_output (L, B, E), avg_attn_weights (B, L, L) or None).
    """
    if key_padding_mask is not None or attn_mask is not None:
        # TODO(synk): key_padding_mask / attn_mask additive masking not implemented.
        raise NotImplementedError("masks are not supported in this kernel")
    if training and dropout_p > 0.0:
        # TODO(synk): training-mode attention dropout not implemented (inference no-op).
        raise NotImplementedError("attention dropout not supported")

    L, B, E = query.shape
    H = num_heads
    assert E % H == 0, "embed_dim must be divisible by num_heads"
    Dh = E // H
    scaling = float(Dh) ** -0.5

    # im2col for the k=3 conv: X_cat[b, t] = [x[t-1] | x[t] | x[t+1]] (zero pad).
    # TODO(synk): for large B*L*E build X_cat inside the kernel (shifted slices
    # + boundary mask) to avoid this extra HBM pass.
    xb = jnp.transpose(query, (1, 0, 2))                    # (B, L, E)
    xp = jnp.pad(xb, ((0, 0), (1, 1), (0, 0)))              # (B, L+2, E)
    x_cat = jnp.concatenate([xp[:, 0:L], xp[:, 1:L + 1], xp[:, 2:L + 2]],
                            axis=-1)                        # (B, L, 3E)
    x_cat = x_cat.reshape(B * L, 3 * E)

    # One fused weight: rows = [tap0^T; tap1^T; tap2^T], cols = [q | k | v].
    # Fold head_dim**-0.5 into the q columns of weight & bias (zero extra cost).
    w_cat = jnp.concatenate([in_proj_weight[:, :, 0].T,
                             in_proj_weight[:, :, 1].T,
                             in_proj_weight[:, :, 2].T], axis=0)       # (3E, 3E)
    col_scale = jnp.concatenate([jnp.full((E,), scaling, jnp.float32),
                                 jnp.ones((2 * E,), jnp.float32)])
    w_cat = (w_cat.astype(jnp.float32) * col_scale[None, :]).astype(query.dtype)
    bias = (in_proj_bias.astype(jnp.float32) * col_scale).reshape(1, 3 * E)

    # Batch blocking: keep >=2 grid steps when possible so both v7x TCs get
    # work, while amortizing per-step overhead (v5e/v6e only pay ~0.35us/step).
    if block_b is None:
        block_b = max(1, B // 2)
    block_b = max(1, min(block_b, B))
    while B % block_b:
        block_b -= 1
    if (block_b * L) % 8 != 0 and block_b != B:
        block_b = B                 # fall back to full-extent block (always legal)
    grid = (B // block_b,)

    kernel = functools.partial(_mha_kernel, num_heads=H, seq_len=L,
                               embed_dim=E, block_b=block_b)

    out_shapes = [jax.ShapeDtypeStruct((B * L, E), query.dtype)]
    out_specs = [pl.BlockSpec((block_b * L, E), lambda i: (i, 0))]
    if need_weights:
        out_shapes.append(jax.ShapeDtypeStruct((B, L, L), query.dtype))
        out_specs.append(pl.BlockSpec((block_b, L, L), lambda i: (i, 0, 0)))

    results = pl.pallas_call(
        kernel,
        out_shape=tuple(out_shapes),
        grid_spec=pltpu.PrefetchScalarGridSpec(
            num_scalar_prefetch=0,
            grid=grid,
            in_specs=[
                pl.BlockSpec((block_b * L, 3 * E), lambda i: (i, 0)),  # X_cat
                pl.BlockSpec((3 * E, 3 * E), lambda i: (0, 0)),        # W_cat (VMEM-resident)
                pl.BlockSpec((1, 3 * E), lambda i: (0, 0)),            # bias
            ],
            out_specs=out_specs,
        ),
        compiler_params=pltpu.CompilerParams(
            dimension_semantics=("parallel",),      # batch blocks shard across TCs
            vmem_limit_bytes=32 * 1024 * 1024,      # raise v5e's 16 MiB default
        ),
    )(x_cat, w_cat, bias)

    if need_weights:
        out_flat, wavg = results
    else:
        out_flat, wavg = results[0], None

    attn_output = jnp.transpose(out_flat.reshape(B, L, E), (1, 0, 2))  # (L, B, E)
    return attn_output, wavg


def mha_ref(query, in_proj_weight, in_proj_bias, num_heads):
    """Pure-JAX mirror of the PyTorch multi_head_attention_forward self-attn path."""
    L, B, E = query.shape
    H = num_heads
    Dh = E // H
    scaling = float(Dh) ** -0.5

    xt = jnp.transpose(query, (1, 2, 0))                         # (B, E, L)
    qkv = jax.lax.conv_general_dilated(
        xt, in_proj_weight, window_strides=(1,), padding=((1, 1),),
        dimension_numbers=("NCH", "OIH", "NCH"))
    qkv = qkv + in_proj_bias[None, :, None]                      # (B, 3E, L)
    q, k, v = jnp.split(qkv, 3, axis=1)
    q = jnp.transpose(q, (2, 0, 1)) * scaling                    # (L, B, E)
    k = jnp.transpose(k, (2, 0, 1))
    v = jnp.transpose(v, (2, 0, 1))

    def heads(t):                                                # -> (B*H, L, Dh)
        return jnp.transpose(t.reshape(L, B * H, Dh), (1, 0, 2))

    qh, kh, vh = heads(q), heads(k), heads(v)
    s = jnp.einsum("bld,bmd->blm", qh, kh)
    p = jax.nn.softmax(s, axis=-1)
    o = jnp.einsum("blm,bmd->bld", p, vh)
    out = jnp.transpose(o, (1, 0, 2)).reshape(L, B, E)
    wavg = p.reshape(B, H, L, L).sum(axis=1) / H
    return out, wavg


if __name__ == "__main__":
    L, B, E, H = 8, 2, 32, 4   # seq, batch, embed_dim, num_heads

    key = jax.random.PRNGKey(0)
    kx, kw, kb = jax.random.split(key, 3)
    query = jax.random.normal(kx, (L, B, E), dtype=jnp.float32)
    in_proj_weight = jax.random.normal(kw, (3 * E, E, 3), dtype=jnp.float32) * 0.15
    in_proj_bias = jax.random.normal(kb, (3 * E,), dtype=jnp.float32) * 0.05
    # Note: the PyTorch forward also takes `bpps` and `attention_weight`, but
    # they are never used in its math, so they are omitted here.

    out, wavg = multihead_self_attention(query, in_proj_weight, in_proj_bias, H)
    jax.block_until_ready((out, wavg))

    ref_out, ref_w = mha_ref(query, in_proj_weight, in_proj_bias, H)
    assert out.shape == (L, B, E) and wavg.shape == (B, L, L)
    assert jnp.allclose(out, ref_out, atol=1e-2, rtol=1e-2), "attn_output mismatch"
    assert jnp.allclose(wavg, ref_w, atol=1e-2, rtol=1e-2), "attn_weights mismatch"
    print("KERNEL_OK")
</pallas_src>

<mosaic_0001>
module attributes {stable_mosaic.version = 11 : i64} {
  func.func @_mha_kernel(%arg0: i32, %arg1: memref<8x96xf32, #tpu.memory_space<vmem>>, %arg2: memref<96x96xf32, #tpu.memory_space<vmem>>, %arg3: memref<1x96xf32, #tpu.memory_space<vmem>>, %arg4: memref<8x32xf32, #tpu.memory_space<vmem>>, %arg5: memref<1x8x8xf32, #tpu.memory_space<vmem>>) attributes {dimension_semantics = [#tpu.dimension_semantics<parallel>], iteration_bounds = array<i64: 2>, scalar_prefetch = 0 : i64, scratch_operands = 0 : i64, tpu.core_type = #tpu.core_type<tc>, window_params = [{transform_indices = @transform_0, window_bounds = array<i64: 8, 96>}, {pipeline_mode = #tpu.pipeline_mode<synchronous>, transform_indices = @transform_1, window_bounds = array<i64: 96, 96>}, {pipeline_mode = #tpu.pipeline_mode<synchronous>, transform_indices = @transform_2, window_bounds = array<i64: 1, 96>}, {transform_indices = @transform_3, window_bounds = array<i64: 8, 32>}, {transform_indices = @transform_4, window_bounds = array<i64: 1, 8, 8>}]} {
    %c0 = arith.constant 0 : index
    %c0_0 = arith.constant 0 : index
    %0 = vector.load %arg1[%c0, %c0_0] : memref<8x96xf32, #tpu.memory_space<vmem>>, vector<8x96xf32>
    %c0_1 = arith.constant 0 : index
    %c0_2 = arith.constant 0 : index
    %1 = vector.load %arg2[%c0_1, %c0_2] : memref<96x96xf32, #tpu.memory_space<vmem>>, vector<96x96xf32>
    %cst = arith.constant dense<0.000000e+00> : vector<8x96xf32>
    %2 = tpu.matmul %0, %1, %cst {dimension_numbers = #tpu.dot_dimension_numbers<[1], [0], [0], [1], [0, 0, 1, 1], [], []>} : vector<8x96xf32>, vector<96x96xf32>, vector<8x96xf32> -> vector<8x96xf32>
    %c0_3 = arith.constant 0 : index
    %c0_4 = arith.constant 0 : index
    %3 = vector.load %arg3[%c0_3, %c0_4] : memref<1x96xf32, #tpu.memory_space<vmem>>, vector<1x96xf32>
    %4 = vector.broadcast %3 : vector<1x96xf32> to vector<8x96xf32>
    %5 = arith.addf %2, %4 : vector<8x96xf32>
    %6 = vector.extract_strided_slice %5 {offsets = [0, 0], sizes = [8, 32], strides = [1, 1]} : vector<8x96xf32> to vector<8x32xf32>
    %7 = vector.extract_strided_slice %5 {offsets = [0, 32], sizes = [8, 32], strides = [1, 1]} : vector<8x96xf32> to vector<8x32xf32>
    %8 = vector.extract_strided_slice %5 {offsets = [0, 64], sizes = [8, 32], strides = [1, 1]} : vector<8x96xf32> to vector<8x32xf32>
    %cst_5 = arith.constant 0.000000e+00 : f32
    %9 = vector.broadcast %cst_5 : f32 to vector<8x8xf32>
    %10 = vector.extract_strided_slice %6 {offsets = [0, 0], sizes = [8, 8], strides = [1, 1]} : vector<8x32xf32> to vector<8x8xf32>
    %11 = vector.extract_strided_slice %7 {offsets = [0, 0], sizes = [8, 8], strides = [1, 1]} : vector<8x32xf32> to vector<8x8xf32>
    %12 = vector.extract_strided_slice %8 {offsets = [0, 0], sizes = [8, 8], strides = [1, 1]} : vector<8x32xf32> to vector<8x8xf32>
    %13 = tpu.transpose %11, [1, 0] : vector<8x8xf32> -> vector<8x8xf32>
    %cst_6 = arith.constant dense<0.000000e+00> : vector<8x8xf32>
    %14 = tpu.matmul %10, %13, %cst_6 {dimension_numbers = #tpu.dot_dimension_numbers<[1], [0], [0], [1], [0, 0, 1, 1], [], []>} : vector<8x8xf32>, vector<8x8xf32>, vector<8x8xf32> -> vector<8x8xf32>
    %cst_7 = arith.constant dense<0xFF800000> : vector<8xf32>
    %15 = vector.multi_reduction <maximumf>, %14, %cst_7 [1] : vector<8x8xf32> to vector<8xf32>
    %16 = vector.shape_cast %15 : vector<8xf32> to vector<8x1xf32>
    %17 = vector.broadcast %16 : vector<8x1xf32> to vector<8x8xf32>
    %18 = arith.subf %14, %17 : vector<8x8xf32>
    %19 = math.exp %18 : vector<8x8xf32>
    %cst_8 = arith.constant dense<0.000000e+00> : vector<8xf32>
    %20 = vector.multi_reduction <add>, %19, %cst_8 [1] : vector<8x8xf32> to vector<8xf32>
    %21 = vector.shape_cast %20 : vector<8xf32> to vector<8x1xf32>
    %22 = tpu.reciprocal %21 {approx = true} : vector<8x1xf32> -> vector<8x1xf32>
    %23 = vector.broadcast %22 : vector<8x1xf32> to vector<8x8xf32>
    %24 = arith.mulf %19, %23 : vector<8x8xf32>
    %cst_9 = arith.constant dense<0.000000e+00> : vector<8x8xf32>
    %25 = tpu.matmul %24, %12, %cst_9 {dimension_numbers = #tpu.dot_dimension_numbers<[1], [0], [0], [1], [0, 0, 1, 1], [], []>} : vector<8x8xf32>, vector<8x8xf32>, vector<8x8xf32> -> vector<8x8xf32>
    %c0_10 = arith.constant 0 : index
    %c0_11 = arith.constant 0 : index
    %26 = vector.load %arg4[%c0_10, %c0_11] : memref<8x32xf32, #tpu.memory_space<vmem>>, vector<8x8xf32>
    tpu.vector_store %arg4[%c0_10, %c0_11], %25 {strides = array<i32>} : memref<8x32xf32, #tpu.memory_space<vmem>>, vector<8x8xf32>,
    %27 = arith.addf %9, %24 : vector<8x8xf32>
    %28 = vector.extract_strided_slice %6 {offsets = [0, 8], sizes = [8, 8], strides = [1, 1]} : vector<8x32xf32> to vector<8x8xf32>
    %29 = vector.extract_strided_slice %7 {offsets = [0, 8], sizes = [8, 8], strides = [1, 1]} : vector<8x32xf32> to vector<8x8xf32>
    %30 = vector.extract_strided_slice %8 {offsets = [0, 8], sizes = [8, 8], strides = [1, 1]} : vector<8x32xf32> to vector<8x8xf32>
    %31 = tpu.transpose %29, [1, 0] : vector<8x8xf32> -> vector<8x8xf32>
    %cst_12 = arith.constant dense<0.000000e+00> : vector<8x8xf32>
    %32 = tpu.matmul %28, %31, %cst_12 {dimension_numbers = #tpu.dot_dimension_numbers<[1], [0], [0], [1], [0, 0, 1, 1], [], []>} : vector<8x8xf32>, vector<8x8xf32>, vector<8x8xf32> -> vector<8x8xf32>
    %cst_13 = arith.constant dense<0xFF800000> : vector<8xf32>
    %33 = vector.multi_reduction <maximumf>, %32, %cst_13 [1] : vector<8x8xf32> to vector<8xf32>
    %34 = vector.shape_cast %33 : vector<8xf32> to vector<8x1xf32>
    %35 = vector.broadcast %34 : vector<8x1xf32> to vector<8x8xf32>
    %36 = arith.subf %32, %35 : vector<8x8xf32>
    %37 = math.exp %36 : vector<8x8xf32>
    %cst_14 = arith.constant dense<0.000000e+00> : vector<8xf32>
    %38 = vector.multi_reduction <add>, %37, %cst_14 [1] : vector<8x8xf32> to vector<8xf32>
    %39 = vector.shape_cast %38 : vector<8xf32> to vector<8x1xf32>
    %40 = tpu.reciprocal %39 {approx = true} : vector<8x1xf32> -> vector<8x1xf32>
    %41 = vector.broadcast %40 : vector<8x1xf32> to vector<8x8xf32>
    %42 = arith.mulf %37, %41 : vector<8x8xf32>
    %cst_15 = arith.constant dense<0.000000e+00> : vector<8x8xf32>
    %43 = tpu.matmul %42, %30, %cst_15 {dimension_numbers = #tpu.dot_dimension_numbers<[1], [0], [0], [1], [0, 0, 1, 1], [], []>} : vector<8x8xf32>, vector<8x8xf32>, vector<8x8xf32> -> vector<8x8xf32>
    %c0_16 = arith.constant 0 : index
    %c8 = arith.constant 8 : index
    %44 = vector.load %arg4[%c0_16, %c8] : memref<8x32xf32, #tpu.memory_space<vmem>>, vector<8x8xf32>
    tpu.vector_store %arg4[%c0_16, %c8], %43 {strides = array<i32>} : memref<8x32xf32, #tpu.memory_space<vmem>>, vector<8x8xf32>,
    %45 = arith.addf %27, %42 : vector<8x8xf32>
    %46 = vector.extract_strided_slice %6 {offsets = [0, 16], sizes = [8, 8], strides = [1, 1]} : vector<8x32xf32> to vector<8x8xf32>
    %47 = vector.extract_strided_slice %7 {offsets = [0, 16], sizes = [8, 8], strides = [1, 1]} : vector<8x32xf32> to vector<8x8xf32>
    %48 = vector.extract_strided_slice %8 {offsets = [0, 16], sizes = [8, 8], strides = [1, 1]} : vector<8x32xf32> to vector<8x8xf32>
    %49 = tpu.transpose %47, [1, 0] : vector<8x8xf32> -> vector<8x8xf32>
    %cst_17 = arith.constant dense<0.000000e+00> : vector<8x8xf32>
    %50 = tpu.matmul %46, %49, %cst_17 {dimension_numbers = #tpu.dot_dimension_numbers<[1], [0], [0], [1], [0, 0, 1, 1], [], []>} : vector<8x8xf32>, vector<8x8xf32>, vector<8x8xf32> -> vector<8x8xf32>
    %cst_18 = arith.constant dense<0xFF800000> : vector<8xf32>
    %51 = vector.multi_reduction <maximumf>, %50, %cst_18 [1] : vector<8x8xf32> to vector<8xf32>
    %52 = vector.shape_cast %51 : vector<8xf32> to vector<8x1xf32>
    %53 = vector.broadcast %52 : vector<8x1xf32> to vector<8x8xf32>
    %54 = arith.subf %50, %53 : vector<8x8xf32>
    %55 = math.exp %54 : vector<8x8xf32>
    %cst_19 = arith.constant dense<0.000000e+00> : vector<8xf32>
    %56 = vector.multi_reduction <add>, %55, %cst_19 [1] : vector<8x8xf32> to vector<8xf32>
    %57 = vector.shape_cast %56 : vector<8xf32> to vector<8x1xf32>
    %58 = tpu.reciprocal %57 {approx = true} : vector<8x1xf32> -> vector<8x1xf32>
    %59 = vector.broadcast %58 : vector<8x1xf32> to vector<8x8xf32>
    %60 = arith.mulf %55, %59 : vector<8x8xf32>
    %cst_20 = arith.constant dense<0.000000e+00> : vector<8x8xf32>
    %61 = tpu.matmul %60, %48, %cst_20 {dimension_numbers = #tpu.dot_dimension_numbers<[1], [0], [0], [1], [0, 0, 1, 1], [], []>} : vector<8x8xf32>, vector<8x8xf32>, vector<8x8xf32> -> vector<8x8xf32>
    %c0_21 = arith.constant 0 : index
    %c16 = arith.constant 16 : index
    %62 = vector.load %arg4[%c0_21, %c16] : memref<8x32xf32, #tpu.memory_space<vmem>>, vector<8x8xf32>
    tpu.vector_store %arg4[%c0_21, %c16], %61 {strides = array<i32>} : memref<8x32xf32, #tpu.memory_space<vmem>>, vector<8x8xf32>,
    %63 = arith.addf %45, %60 : vector<8x8xf32>
    %64 = vector.extract_strided_slice %6 {offsets = [0, 24], sizes = [8, 8], strides = [1, 1]} : vector<8x32xf32> to vector<8x8xf32>
    %65 = vector.extract_strided_slice %7 {offsets = [0, 24], sizes = [8, 8], strides = [1, 1]} : vector<8x32xf32> to vector<8x8xf32>
    %66 = vector.extract_strided_slice %8 {offsets = [0, 24], sizes = [8, 8], strides = [1, 1]} : vector<8x32xf32> to vector<8x8xf32>
    %67 = tpu.transpose %65, [1, 0] : vector<8x8xf32> -> vector<8x8xf32>
    %cst_22 = arith.constant dense<0.000000e+00> : vector<8x8xf32>
    %68 = tpu.matmul %64, %67, %cst_22 {dimension_numbers = #tpu.dot_dimension_numbers<[1], [0], [0], [1], [0, 0, 1, 1], [], []>} : vector<8x8xf32>, vector<8x8xf32>, vector<8x8xf32> -> vector<8x8xf32>
    %cst_23 = arith.constant dense<0xFF800000> : vector<8xf32>
    %69 = vector.multi_reduction <maximumf>, %68, %cst_23 [1] : vector<8x8xf32> to vector<8xf32>
    %70 = vector.shape_cast %69 : vector<8xf32> to vector<8x1xf32>
    %71 = vector.broadcast %70 : vector<8x1xf32> to vector<8x8xf32>
    %72 = arith.subf %68, %71 : vector<8x8xf32>
    %73 = math.exp %72 : vector<8x8xf32>
    %cst_24 = arith.constant dense<0.000000e+00> : vector<8xf32>
    %74 = vector.multi_reduction <add>, %73, %cst_24 [1] : vector<8x8xf32> to vector<8xf32>
    %75 = vector.shape_cast %74 : vector<8xf32> to vector<8x1xf32>
    %76 = tpu.reciprocal %75 {approx = true} : vector<8x1xf32> -> vector<8x1xf32>
    %77 = vector.broadcast %76 : vector<8x1xf32> to vector<8x8xf32>
    %78 = arith.mulf %73, %77 : vector<8x8xf32>
    %cst_25 = arith.constant dense<0.000000e+00> : vector<8x8xf32>
    %79 = tpu.matmul %78, %66, %cst_25 {dimension_numbers = #tpu.dot_dimension_numbers<[1], [0], [0], [1], [0, 0, 1, 1], [], []>} : vector<8x8xf32>, vector<8x8xf32>, vector<8x8xf32> -> vector<8x8xf32>
    %c0_26 = arith.constant 0 : index
    %c24 = arith.constant 24 : index
    %80 = vector.load %arg4[%c0_26, %c24] : memref<8x32xf32, #tpu.memory_space<vmem>>, vector<8x8xf32>
    tpu.vector_store %arg4[%c0_26, %c24], %79 {strides = array<i32>} : memref<8x32xf32, #tpu.memory_space<vmem>>, vector<8x8xf32>,
    %81 = arith.addf %63, %78 : vector<8x8xf32>
    %cst_27 = arith.constant 2.500000e-01 : f32
    %82 = vector.broadcast %cst_27 : f32 to vector<8x8xf32>
    %83 = arith.mulf %81, %82 : vector<8x8xf32>
    %c0_28 = arith.constant 0 : index
    %c0_29 = arith.constant 0 : index
    %c0_30 = arith.constant 0 : index
    %84 = vector.load %arg5[%c0_28, %c0_29, %c0_30] : memref<1x8x8xf32, #tpu.memory_space<vmem>>, vector<1x8x8xf32>
    %85 = vector.shape_cast %84 : vector<1x8x8xf32> to vector<8x8xf32>
    %86 = vector.shape_cast %83 : vector<8x8xf32> to vector<1x8x8xf32>
    tpu.vector_store %arg5[%c0_28, %c0_29, %c0_30], %86 {strides = array<i32>} : memref<1x8x8xf32, #tpu.memory_space<vmem>>, vector<1x8x8xf32>,
    return
  }
  func.func @transform_0(%arg0: i32) -> (i32, i32) {
    %c0_i32 = arith.constant 0 : i32
    %c0_i32_0 = arith.constant 0 : i32
    return %arg0, %c0_i32 : i32, i32
  }
  func.func @transform_1(%arg0: i32) -> (i32, i32) {
    %c0_i32 = arith.constant 0 : i32
    %c0_i32_0 = arith.constant 0 : i32
    %c0_i32_1 = arith.constant 0 : i32
    return %c0_i32, %c0_i32_0 : i32, i32
  }
  func.func @transform_2(%arg0: i32) -> (i32, i32) {
    %c0_i32 = arith.constant 0 : i32
    %c0_i32_0 = arith.constant 0 : i32
    %c0_i32_1 = arith.constant 0 : i32
    return %c0_i32, %c0_i32_0 : i32, i32
  }
  func.func @transform_3(%arg0: i32) -> (i32, i32) {
    %c0_i32 = arith.constant 0 : i32
    %c0_i32_0 = arith.constant 0 : i32
    return %arg0, %c0_i32 : i32, i32
  }
  func.func @transform_4(%arg0: i32) -> (i32, i32, i32) {
    %c0_i32 = arith.constant 0 : i32
    %c0_i32_0 = arith.constant 0 : i32
    %c0_i32_1 = arith.constant 0 : i32
    return %arg0, %c0_i32, %c0_i32_0 : i32, i32, i32
  }
}

</mosaic_0001>

<llo_original>
// kernel: tpu_custom_call.1
$region0: #{tpu_custom_call.1}
  #allocation0 [shape = 'u32[]', space=smem, size = 0x4, offset = 0x4, fixed_abs, tag = 'smem constant byte address 0x4 - core index']
  #allocation1 [shape = 'u32[72,128]{1,0:T(1,128)}', space=vmem, size = 0x9000, scoped, tag = 'internal scratch']
  %s0 = inlined_call_operand.hbm [shape: f32[16,96], index: 0, kind: input, shape index: {}]
  %s1 = inlined_call_operand.hbm [shape: f32[96,96], index: 1, kind: input, shape index: {}]
  %s2 = inlined_call_operand.vmem [shape: f32[1,96], index: 2, kind: input, shape index: {}]
  %s3 = inlined_call_operand.hbm [shape: f32[16,32], index: 3, kind: output, shape index: {0}]
  %s4 = inlined_call_operand.hbm [shape: f32[2,8,8], index: 4, kind: output, shape index: {1}]
  %5 = xla_tuple %s3, %s4
  %s6 = sld [smem:[#allocation0]]
  $region61: #{tpu_custom_call.1} parent=0
    _
  %s8 = ssub.s32 1, %s6
  %s9 = scalar_select 0, %s8, %s6
  $region1: #{tpu_custom_call.1} parent=0
    #allocation2 [shape = 'u8[8192]{0}', space=vmem, size = 0x2000, scoped, tag = 'input window, operand 0']
    #allocation3 [shape = 's32[2]{0}', space=sflag, size = 0x8, scoped, tag = 'scoped memory for tpu_custom_call.1']
    #allocation4 [shape = 's32[2]{0}', space=sflag, size = 0x8, scoped, tag = 'scoped memory for tpu_custom_call.1']
    #allocation5 [shape = 'u8[49152]{0}', space=vmem, size = 0xc000, scoped, tag = 'input window, operand 1, single buffered']
    #allocation6 [shape = 's32[1]{0}', space=sflag, size = 0x4, scoped, tag = 'scoped memory for tpu_custom_call.1']
    #allocation7 [shape = 'u8[8192]{0}', space=vmem, size = 0x2000, scoped, tag = 'output window, operand 0']
    #allocation8 [shape = 'u8[8192]{0}', space=vmem, size = 0x2000, scoped, tag = 'output window, operand 1']
    #allocation9 [shape = 's32[2]{0}', space=sflag, size = 0x8, scoped, tag = 'scoped memory for tpu_custom_call.1']
    %10 = vsyncpa [#allocation3], 0
    %s11 = scalar_lea.sflag [#allocation3], 1
    %12 = vsyncpa %s11, 0
    %13 = vsyncpa [#allocation6], 0
    %14 = vsyncpa [#allocation4], 0
    %s15 = scalar_lea.sflag [#allocation4], 1
    %16 = vsyncpa %s15, 0
    %17 = vsyncpa [#allocation9], 0
    %s18 = scalar_lea.sflag [#allocation9], 1
    %19 = vsyncpa %s18, 0
    loop: start=0, step=1, limit=4
    $region2: #{tpu_custom_call.1} parent=1 // loop_pre_header
      _
    $region3: #{tpu_custom_call.1} parent=1 // loop_header
      %s21 = sphi 0, %s25
      %p22 = scmp.ge.s32.totalorder %s21, 4
      %s31 = sphi 0, %s33
      %s34 = sphi 0, %s31
      %s35 = sphi 0, %s34
      %s51 = sphi 0, %s35
      %s55 = sphi 0, %s55
      %s57 = sphi 0, %s55
      %s58 = sphi 0, %s57
      %s72 = sphi 0, %s58
      %s76 = sphi 0, %s76
      %s78 = sphi 0, %s76
      %s79 = sphi 0, %s78
      %s93 = sphi 0, %s79
      %s99 = sphi 0, %s101
      %s102 = sphi 0, %s99
      %s103 = sphi 0, %s102
      %s119 = sphi 0, %s103
      %s125 = sphi 0, %s127
      %s128 = sphi 0, %s125
      %s129 = sphi 0, %s128
      %s145 = sphi 0, %s129
    $region4: #{tpu_custom_call.1} parent=1 // loop_header_branch
      %24 = sbr.rel (%p22) target = $region8
    $region5: #{tpu_custom_call.1} parent=1 // loop_body
      %s26 = ssub.s32 %s21, 1
      %s27 = ssub.s32 %s21, 2
      %s28 = sadd.s32 %s21, 1
      %s29 = ssub.s32 %s21, %s28
      %p30 = scmp.eq.s32.totalorder %s29, 0
      %s32 = sadd.s32 %s31, 1
      %s33 = scalar_select %p30, %s31, %s32
      %p36 = pneg %p30
      %p37 = scmp.eq.s32.totalorder %s21, 1
      %p38 = por %p36, %p37
      %p39 = scmp.ne.s32.totalorder %s31, %s34
      %p40 = scmp.eq.s32.totalorder %s21, 0
      %p41 = por %p39, %p40
      %p42 = scmp.ne.s32.totalorder %s31, %s34
      %p43 = scmp.eq.s32.totalorder %s26, 1
      %p44 = por %p42, %p43
      %p45 = scmp.ne.s32.totalorder %s34, %s35
      %p46 = scmp.eq.s32.totalorder %s26, 0
      %p47 = por %p45, %p46
      %p48 = scmp.ne.s32.totalorder %s34, %s35
      %p49 = scmp.eq.s32.totalorder %s27, 1
      %p50 = por %p48, %p49
      %p52 = scmp.ne.s32.totalorder %s35, %s51
      %p53 = scmp.eq.s32.totalorder %s27, 0
      %p54 = por %p52, %p53
      %s56 = sadd.s32 %s55, 1
      %p59 = scmp.eq.s32.totalorder %s21, 1
      %p60 = scmp.ne.s32.totalorder %s55, %s57
      %p61 = scmp.eq.s32.totalorder %s21, 0
      %p62 = por %p60, %p61
      %p63 = scmp.ne.s32.totalorder %s55, %s57
      %p64 = scmp.eq.s32.totalorder %s26, 1
      %p65 = por %p63, %p64
      %p66 = scmp.ne.s32.totalorder %s57, %s58
      %p67 = scmp.eq.s32.totalorder %s26, 0
      %p68 = por %p66, %p67
      %p69 = scmp.ne.s32.totalorder %s57, %s58
      %p70 = scmp.eq.s32.totalorder %s27, 1
      %p71 = por %p69, %p70
      %p73 = scmp.ne.s32.totalorder %s58, %s72
      %p74 = scmp.eq.s32.totalorder %s27, 0
      %p75 = por %p73, %p74
      %s77 = sadd.s32 %s76, 1
      %p80 = scmp.eq.s32.totalorder %s21, 1
      %p81 = scmp.ne.s32.totalorder %s76, %s78
      %p82 = scmp.eq.s32.totalorder %s21, 0
      %p83 = por %p81, %p82
      %p84 = scmp.ne.s32.totalorder %s76, %s78
      %p85 = scmp.eq.s32.totalorder %s26, 1
      %p86 = por %p84, %p85
      %p87 = scmp.ne.s32.totalorder %s78, %s79
      %p88 = scmp.eq.s32.totalorder %s26, 0
      %p89 = por %p87, %p88
      %p90 = scmp.ne.s32.totalorder %s78, %s79
      %p91 = scmp.eq.s32.totalorder %s27, 1
      %p92 = por %p90, %p91
      %p94 = scmp.ne.s32.totalorder %s79, %s93
      %p95 = scmp.eq.s32.totalorder %s27, 0
      %p96 = por %p94, %p95
      %s97 = ssub.s32 %s21, %s28
      %p98 = scmp.eq.s32.totalorder %s97, 0
      %s100 = sadd.s32 %s99, 1
      %s101 = scalar_select %p98, %s99, %s100
      %p104 = pneg %p98
      %p105 = scmp.eq.s32.totalorder %s21, 1
      %p106 = por %p104, %p105
      %p107 = scmp.ne.s32.totalorder %s99, %s102
      %p108 = scmp.eq.s32.totalorder %s21, 0
      %p109 = por %p107, %p108
      %p110 = scmp.ne.s32.totalorder %s99, %s102
      %p111 = scmp.eq.s32.totalorder %s26, 1
      %p112 = por %p110, %p111
      %p113 = scmp.ne.s32.totalorder %s102, %s103
      %p114 = scmp.eq.s32.totalorder %s26, 0
      %p115 = por %p113, %p114
      %p116 = scmp.ne.s32.totalorder %s102, %s103
      %p117 = scmp.eq.s32.totalorder %s27, 1
      %p118 = por %p116, %p117
      %p120 = scmp.ne.s32.totalorder %s103, %s119
      %p121 = scmp.eq.s32.totalorder %s27, 0
      %p122 = por %p120, %p121
      %s123 = ssub.s32 %s21, %s28
      %p124 = scmp.eq.s32.totalorder %s123, 0
      %s126 = sadd.s32 %s125, 1
      %s127 = scalar_select %p124, %s125, %s126
      %p130 = pneg %p124
      %p131 = scmp.eq.s32.totalorder %s21, 1
      %p132 = por %p130, %p131
      %p133 = scmp.ne.s32.totalorder %s125, %s128
      %p134 = scmp.eq.s32.totalorder %s21, 0
      %p135 = por %p133, %p134
      %p136 = scmp.ne.s32.totalorder %s125, %s128
      %p137 = scmp.eq.s32.totalorder %s26, 1
      %p138 = por %p136, %p137
      %p139 = scmp.ne.s32.totalorder %s128, %s129
      %p140 = scmp.eq.s32.totalorder %s26, 0
      %p141 = por %p139, %p140
      %p142 = scmp.ne.s32.totalorder %s128, %s129
      %p143 = scmp.eq.s32.totalorder %s27, 1
      %p144 = por %p142, %p143
      %p146 = scmp.ne.s32.totalorder %s129, %s145
      %p147 = scmp.eq.s32.totalorder %s27, 0
      %p148 = por %p146, %p147
      %p149 = scmp.le.s32.totalorder 1, %s21
      %p150 = scmp.lt.s32.totalorder %s21, 3
      %p151 = pnand %p149, %p150
      %p152 = pneg %p151
      // Predicated region
      $region9: #{tpu_custom_call.1} parent=5 // pred_check
        _
      $region10: #{tpu_custom_call.1} parent=5 // pred_check_branch
        %154 = sbr.rel (%p151) target = $region12
      $region11: #{tpu_custom_call.1} parent=5 // pred_region
        %s155 = ssub.s32 %s21, 1
        // Predicated region
        $region13: #{tpu_custom_call.1} parent=11 // pred_check
          %p156 = pneg %p68
        $region14: #{tpu_custom_call.1} parent=11 // pred_check_branch
          %158 = sbr.rel (%p156) target = $region16
        $region15: #{tpu_custom_call.1} parent=11 // pred_region
          %160 = vsyncadd [#allocation6], 0
          %s161 = sshll.u32 %s1, 4
          %s162 = int_to_ptr.hbm [resolvable:$true] %s161
          %s163 = sshll.u32 [#allocation5], 4
          %s164 = int_to_ptr.vmem [resolvable:$true] %s163
          %169 = dma.hbm_to_vmem [thread:$0]  %s162, 1536, %s164, [#allocation6], 128, 128, 8
        $region16: #{tpu_custom_call.1} parent=11 // pred_fallthru
          _
        // Predicated region
        $region17: #{tpu_custom_call.1} parent=11 // pred_check
          %p170 = pneg %p89
        $region18: #{tpu_custom_call.1} parent=11 // pred_check_branch
          %172 = sbr.rel (%p170) target = $region20
        $region19: #{tpu_custom_call.1} parent=11 // pred_region
          _
        $region20: #{tpu_custom_call.1} parent=11 // pred_fallthru
          _
      $region12: #{tpu_custom_call.1} parent=5 // pred_fallthru
        _
      %p173 = scmp.lt.s32.totalorder %s21, 2
      // Predicated region
      $region21: #{tpu_custom_call.1} parent=5 // pred_check
        %p174 = pneg %p173
      $region22: #{tpu_custom_call.1} parent=5 // pred_check_branch
        %176 = sbr.rel (%p174) target = $region24
      $region23: #{tpu_custom_call.1} parent=5 // pred_region
        // Predicated region
        $region25: #{tpu_custom_call.1} parent=23 // pred_check
          %p177 = pneg %p41
        $region26: #{tpu_custom_call.1} parent=23 // pred_check_branch
          %179 = sbr.rel (%p177) target = $region28
        $region27: #{tpu_custom_call.1} parent=23 // pred_region
          %s180 = sand.u32 %s31, 1
          %s181 = scalar_lea.sflag [#allocation3], %s180
          %s182 = sand.u32 %s31, 1
          %s183 = smul.addr %s182, 8
          %s184 = scalar_lea.vmem [#allocation2], %s183
          %186 = vsyncadd %s181, 0
          %s187 = smul.addr %s21, 8
          %s188 = scalar_lea.hbm %s0, %s187
          %s190 = sshll.u32 %s188, 4
          %s191 = int_to_ptr.hbm [resolvable:$true] %s190
          %s192 = sshll.u32 %s184, 4
          %s193 = int_to_ptr.vmem [resolvable:$true] %s192
          %195 = dma.hbm_to_vmem [thread:$0]  %s191, 128, %s193, %s181
        $region28: #{tpu_custom_call.1} parent=23 // pred_fallthru
          _
      $region24: #{tpu_custom_call.1} parent=5 // pred_fallthru
        _
      %p196 = scmp.le.s32.totalorder 1, %s21
      %p197 = scmp.lt.s32.totalorder %s21, 3
      %p198 = pnand %p196, %p197
      %p199 = pneg %p198
      // Predicated region
      $region29: #{tpu_custom_call.1} parent=5 // pred_check
        _
      $region30: #{tpu_custom_call.1} parent=5 // pred_check_branch
        %201 = sbr.rel (%p198) target = $region32
      $region31: #{tpu_custom_call.1} parent=5 // pred_region
        %s202 = ssub.s32 %s21, 1
        %s203 = sand.u32 %s34, 1
        %s204 = scalar_lea.sflag [#allocation3], %s203
        %s205 = sand.u32 %s34, 1
        %s206 = smul.addr %s205, 8
        %s207 = scalar_lea.vmem [#allocation2], %s206
        // Predicated region
        $region33: #{tpu_custom_call.1} parent=31 // pred_check
          %p208 = pneg %p47
        $region34: #{tpu_custom_call.1} parent=31 // pred_check_branch
          %210 = sbr.rel (%p208) target = $region36
        $region35: #{tpu_custom_call.1} parent=31 // pred_region
          %212 = dma.done %s204, 128
        $region36: #{tpu_custom_call.1} parent=31 // pred_fallthru
          _
        // Predicated region
        $region37: #{tpu_custom_call.1} parent=31 // pred_check
          %p213 = pneg %p68
        $region38: #{tpu_custom_call.1} parent=31 // pred_check_branch
          %215 = sbr.rel (%p213) target = $region40
        $region39: #{tpu_custom_call.1} parent=31 // pred_region
          %217 = dma.done [#allocation6], 1536
        $region40: #{tpu_custom_call.1} parent=31 // pred_fallthru
          _
        %s218 = sand.u32 %s34, 1
        %s219 = scalar_lea.sflag [#allocation3], %s218
        %s220 = sand.u32 %s34, 1
        %s221 = smul.addr %s220, 8
        %s222 = scalar_lea.vmem [#allocation2], %s221
        %p223 = pneg %p47
        %p224 = pneg %p44
        %p225 = pneg %p68
        %p226 = pneg %p65
        %p227 = pneg %p89
        %p228 = pneg %p86
        %p229 = pneg %p115
        %p230 = pneg %p112
        %s231 = sand.u32 %s102, 1
        %s232 = scalar_lea.sflag [#allocation4], %s231
        %s233 = sand.u32 %s102, 1
        %s234 = smul.addr %s233, 8
        %s235 = scalar_lea.vmem [#allocation7], %s234
        %p236 = pneg %p141
        %p237 = pneg %p138
        %s238 = sand.u32 %s128, 1
        %s239 = scalar_lea.sflag [#allocation9], %s238
        %s240 = sand.u32 %s128, 1
        %s241 = smul.addr %s240, 8
        %s242 = scalar_lea.vmem [#allocation8], %s241
        %v243 = vld [vmem:[%s207] sm:$0xff]
        %v244 = vld [vmem:[#allocation5] sm:$0xff]
        %v245 = vld [vmem:[#allocation5 + $0x8] sm:$0xff]
        %v246 = vld [vmem:[#allocation5 + $0x10] sm:$0xff]
        %v247 = vld [vmem:[#allocation5 + $0x18] sm:$0xff]
        %v248 = vld [vmem:[#allocation5 + $0x20] sm:$0xff]
        %v249 = vld [vmem:[#allocation5 + $0x28] sm:$0xff]
        %v250 = vld [vmem:[#allocation5 + $0x30] sm:$0xff]
        %v251 = vld [vmem:[#allocation5 + $0x38] sm:$0xff]
        %v252 = vld [vmem:[#allocation5 + $0x40] sm:$0xff]
        %v253 = vld [vmem:[#allocation5 + $0x48] sm:$0xff]
        %v254 = vld [vmem:[#allocation5 + $0x50] sm:$0xff]
        %v255 = vld [vmem:[#allocation5 + $0x58] sm:$0xff]
        %v256 = vld [vmem:[%s2] sm:$0x1]
        %v258 = vperm.slane %v256, 0
        %vm260 = vcmask 785408
        %v262 = vsel %vm260, %v243, 0
        %264 = vmatpush.msra.mxu0 0.0
        %265 = vmatpush.msra.mxu0 0.0
        %266 = vmatpush.msra.mxu0 0.0
        %267 = vmatpush.msra.mxu0 0.0
        %268 = vmatpush.msra.mxu0 %v255
        %269 = vmatpush.msra.mxu0 %v254
        %270 = vmatpush.msra.mxu0 %v253
        %271 = vmatpush.msra.mxu0 %v252
        %272 = vmatpush.msra.mxu0 %v251
        %273 = vmatpush.msra.mxu0 %v250
        %274 = vmatpush.msra.mxu0 %v249
        %275 = vmatpush.msra.mxu0 %v248
        %276 = vmatpush.msra.mxu0 %v247
        %277 = vmatpush.msra.mxu0 %v246
        %278 = vmatpush.msra.mxu0 %v245
        %279 = vmatpush.msra.mxu0 %v244
        %280 = vmatmul.f32.gmra.mxu0 %v262
        %v281 = vpop.f32.mrf.mxu0
        %v282 = vadd.f32 %v258, %v281
        %283 = vdwg.mxu0
        %285 = vrot.lane.b32.xlu0 %v282, 96
        %v286 = vpop.permute.xlu0 %285
        %vm287 = vcmask 64512
        %v288 = vsel %vm287, %v282, 0
        %v290 = vsel %vm287, %v286, 0
        %292 = vmatpush.xpose.msra.mxu0 0.0
        %293 = vmatpush.xpose.msra.mxu0 0.0
        %294 = vmatpush.xpose.msra.mxu0 0.0
        %295 = vmatpush.xpose.msra.mxu0 0.0
        %296 = vmatpush.xpose.msra.mxu0 0.0
        %297 = vmatpush.xpose.msra.mxu0 0.0
        %298 = vmatpush.xpose.msra.mxu0 0.0
        %299 = vmatpush.xpose.msra.mxu0 0.0
        %300 = vmatpush.xpose.msra.mxu0 0.0
        %301 = vmatpush.xpose.msra.mxu0 0.0
        %302 = vmatpush.xpose.msra.mxu0 0.0
        %303 = vmatpush.xpose.msra.mxu0 0.0
        %304 = vmatpush.xpose.msra.mxu0 0.0
        %305 = vmatpush.xpose.msra.mxu0 0.0
        %306 = vmatpush.xpose.msra.mxu0 0.0
        %307 = vmatpush.xpose.msra.mxu0 %v290
        %308 = vmatmul.f32.gmra.mxu0 %v288
        %v309 = vpop.f32.mrf.mxu0
        %v310 = vadd.f32 0.0, %v309
        %311 = vdwg.mxu0
        %v312 = vsel %vm287, %v310, -inf
        %313 = vmax.xlane.f32.xlu0 %v312
        %v314 = vpop.xlane.xlu0 %313
        %v315 = vsub.f32 %v310, %v314
        %v316 = vmul.f32 %v315, 1.442695
        %v317 = vpow.pop %v316
        %v318 = vsel %vm287, %v317, 0.0
        %319 = vadd.xlane.f32.xlu0 %v318
        %v320 = vpop.xlane.xlu0 %319
        %v321 = vrcp.pop %v320
        %v322 = vmul.f32 %v317, %v321
        %323 = vrot.lane.b32.xlu0 %v282, 64
        %v324 = vpop.permute.xlu0 %323
        %v327 = vsel %vm287, %v322, 0
        %329 = vmatpush.msra.mxu0 0.0
        %330 = vmatpush.msra.mxu0 0.0
        %331 = vmatpush.msra.mxu0 0.0
        %332 = vmatpush.msra.mxu0 0.0
        %333 = vmatpush.msra.mxu0 0.0
        %334 = vmatpush.msra.mxu0 0.0
        %335 = vmatpush.msra.mxu0 0.0
        %336 = vmatpush.msra.mxu0 0.0
        %337 = vmatpush.msra.mxu0 0.0
        %338 = vmatpush.msra.mxu0 0.0
        %339 = vmatpush.msra.mxu0 0.0
        %340 = vmatpush.msra.mxu0 0.0
        %341 = vmatpush.msra.mxu0 0.0
        %342 = vmatpush.msra.mxu0 0.0
        %343 = vmatpush.msra.mxu0 0.0
        %344 = vmatpush.msra.mxu0 %v324
        %345 = vmatmul.f32.gmra.mxu0 %v327
        %v346 = vpop.f32.mrf.mxu0
        %v347 = vadd.f32 0.0, %v346
        %348 = vdwg.mxu0
        %349 = vst.msk [vmem:[%s235] sm:$0xff] %vm287, %v347
        %v350 = vadd.f32 %v322, 0.0
        %351 = vrot.lane.b32.xlu0 %v282, 120
        %v352 = vpop.permute.xlu0 %351
        %353 = vrot.lane.b32.xlu0 %v282, 88
        %v354 = vpop.permute.xlu0 %353
        %v355 = vsel %vm287, %v352, 0
        %v357 = vsel %vm287, %v354, 0
        %359 = vmatpush.xpose.msra.mxu0 0.0
        %360 = vmatpush.xpose.msra.mxu0 0.0
        %361 = vmatpush.xpose.msra.mxu0 0.0
        %362 = vmatpush.xpose.msra.mxu0 0.0
        %363 = vmatpush.xpose.msra.mxu0 0.0
        %364 = vmatpush.xpose.msra.mxu0 0.0
        %365 = vmatpush.xpose.msra.mxu0 0.0
        %366 = vmatpush.xpose.msra.mxu0 0.0
        %367 = vmatpush.xpose.msra.mxu0 0.0
        %368 = vmatpush.xpose.msra.mxu0 0.0
        %369 = vmatpush.xpose.msra.mxu0 0.0
        %370 = vmatpush.xpose.msra.mxu0 0.0
        %371 = vmatpush.xpose.msra.mxu0 0.0
        %372 = vmatpush.xpose.msra.mxu0 0.0
        %373 = vmatpush.xpose.msra.mxu0 0.0
        %374 = vmatpush.xpose.msra.mxu0 %v357
        %375 = vmatmul.f32.gmra.mxu0 %v355
        %v376 = vpop.f32.mrf.mxu0
        %v377 = vadd.f32 0.0, %v376
        %378 = vdwg.mxu0
        %v379 = vsel %vm287, %v377, -inf
        %380 = vmax.xlane.f32.xlu0 %v379
        %v381 = vpop.xlane.xlu0 %380
        %v382 = vsub.f32 %v377, %v381
        %v383 = vmul.f32 %v382, 1.442695
        %v384 = vpow.pop %v383
        %v385 = vsel %vm287, %v384, 0.0
        %386 = vadd.xlane.f32.xlu0 %v385
        %v387 = vpop.xlane.xlu0 %386
        %v388 = vrcp.pop %v387
        %v389 = vmul.f32 %v384, %v388
        %390 = vrot.lane.b32.xlu0 %v282, 56
        %v391 = vpop.permute.xlu0 %390
        %v394 = vsel %vm287, %v389, 0
        %396 = vmatpush.msra.mxu0 0.0
        %397 = vmatpush.msra.mxu0 0.0
        %398 = vmatpush.msra.mxu0 0.0
        %399 = vmatpush.msra.mxu0 0.0
        %400 = vmatpush.msra.mxu0 0.0
        %401 = vmatpush.msra.mxu0 0.0
        %402 = vmatpush.msra.mxu0 0.0
        %403 = vmatpush.msra.mxu0 0.0
        %404 = vmatpush.msra.mxu0 0.0
        %405 = vmatpush.msra.mxu0 0.0
        %406 = vmatpush.msra.mxu0 0.0
        %407 = vmatpush.msra.mxu0 0.0
        %408 = vmatpush.msra.mxu0 0.0
        %409 = vmatpush.msra.mxu0 0.0
        %410 = vmatpush.msra.mxu0 0.0
        %411 = vmatpush.msra.mxu0 %v391
        %412 = vmatmul.f32.gmra.mxu0 %v394
        %v413 = vpop.f32.mrf.mxu0
        %v414 = vadd.f32 0.0, %v413
        %415 = vdwg.mxu0
        %417 = vrot.lane.b32.xlu0 %v414, 8
        %v418 = vpop.permute.xlu0 %417
        %vm420 = vcmask 130112
        %421 = vst.msk [vmem:[%s235] sm:$0xff] %vm420, %v418
        %v422 = vadd.f32 %v350, %v389
        %423 = vrot.lane.b32.xlu0 %v282, 112
        %v424 = vpop.permute.xlu0 %423
        %425 = vrot.lane.b32.xlu0 %v282, 80
        %v426 = vpop.permute.xlu0 %425
        %v427 = vsel %vm287, %v424, 0
        %v429 = vsel %vm287, %v426, 0
        %431 = vmatpush.xpose.msra.mxu0 0.0
        %432 = vmatpush.xpose.msra.mxu0 0.0
        %433 = vmatpush.xpose.msra.mxu0 0.0
        %434 = vmatpush.xpose.msra.mxu0 0.0
        %435 = vmatpush.xpose.msra.mxu0 0.0
        %436 = vmatpush.xpose.msra.mxu0 0.0
        %437 = vmatpush.xpose.msra.mxu0 0.0
        %438 = vmatpush.xpose.msra.mxu0 0.0
        %439 = vmatpush.xpose.msra.mxu0 0.0
        %440 = vmatpush.xpose.msra.mxu0 0.0
        %441 = vmatpush.xpose.msra.mxu0 0.0
        %442 = vmatpush.xpose.msra.mxu0 0.0
        %443 = vmatpush.xpose.msra.mxu0 0.0
        %444 = vmatpush.xpose.msra.mxu0 0.0
        %445 = vmatpush.xpose.msra.mxu0 0.0
        %446 = vmatpush.xpose.msra.mxu0 %v429
        %447 = vmatmul.f32.gmra.mxu0 %v427
        %v448 = vpop.f32.mrf.mxu0
        %v449 = vadd.f32 0.0, %v448
        %450 = vdwg.mxu0
        %v451 = vsel %vm287, %v449, -inf
        %452 = vmax.xlane.f32.xlu0 %v451
        %v453 = vpop.xlane.xlu0 %452
        %v454 = vsub.f32 %v449, %v453
        %v455 = vmul.f32 %v454, 1.442695
        %v456 = vpow.pop %v455
        %v457 = vsel %vm287, %v456, 0.0
        %458 = vadd.xlane.f32.xlu0 %v457
        %v459 = vpop.xlane.xlu0 %458
        %v460 = vrcp.pop %v459
        %v461 = vmul.f32 %v456, %v460
        %462 = vrot.lane.b32.xlu0 %v282, 48
        %v463 = vpop.permute.xlu0 %462
        %v466 = vsel %vm287, %v461, 0
        %468 = vmatpush.msra.mxu0 0.0
        %469 = vmatpush.msra.mxu0 0.0
        %470 = vmatpush.msra.mxu0 0.0
        %471 = vmatpush.msra.mxu0 0.0
        %472 = vmatpush.msra.mxu0 0.0
        %473 = vmatpush.msra.mxu0 0.0
        %474 = vmatpush.msra.mxu0 0.0
        %475 = vmatpush.msra.mxu0 0.0
        %476 = vmatpush.msra.mxu0 0.0
        %477 = vmatpush.msra.mxu0 0.0
        %478 = vmatpush.msra.mxu0 0.0
        %479 = vmatpush.msra.mxu0 0.0
        %480 = vmatpush.msra.mxu0 0.0
        %481 = vmatpush.msra.mxu0 0.0
        %482 = vmatpush.msra.mxu0 0.0
        %483 = vmatpush.msra.mxu0 %v463
        %484 = vmatmul.f32.gmra.mxu0 %v466
        %v485 = vpop.f32.mrf.mxu0
        %v486 = vadd.f32 0.0, %v485
        %487 = vdwg.mxu0
        %489 = vrot.lane.b32.xlu0 %v486, 16
        %v490 = vpop.permute.xlu0 %489
        %vm492 = vcmask 195712
        %493 = vst.msk [vmem:[%s235] sm:$0xff] %vm492, %v490
        %v494 = vadd.f32 %v422, %v461
        %495 = vrot.lane.b32.xlu0 %v282, 104
        %v496 = vpop.permute.xlu0 %495
        %497 = vrot.lane.b32.xlu0 %v282, 72
        %v498 = vpop.permute.xlu0 %497
        %v499 = vsel %vm287, %v496, 0
        %v501 = vsel %vm287, %v498, 0
        %503 = vmatpush.xpose.msra.mxu0 0.0
        %504 = vmatpush.xpose.msra.mxu0 0.0
        %505 = vmatpush.xpose.msra.mxu0 0.0
        %506 = vmatpush.xpose.msra.mxu0 0.0
        %507 = vmatpush.xpose.msra.mxu0 0.0
        %508 = vmatpush.xpose.msra.mxu0 0.0
        %509 = vmatpush.xpose.msra.mxu0 0.0
        %510 = vmatpush.xpose.msra.mxu0 0.0
        %511 = vmatpush.xpose.msra.mxu0 0.0
        %512 = vmatpush.xpose.msra.mxu0 0.0
        %513 = vmatpush.xpose.msra.mxu0 0.0
        %514 = vmatpush.xpose.msra.mxu0 0.0
        %515 = vmatpush.xpose.msra.mxu0 0.0
        %516 = vmatpush.xpose.msra.mxu0 0.0
        %517 = vmatpush.xpose.msra.mxu0 0.0
        %518 = vmatpush.xpose.msra.mxu0 %v501
        %519 = vmatmul.f32.gmra.mxu0 %v499
        %v520 = vpop.f32.mrf.mxu0
        %v521 = vadd.f32 0.0, %v520
        %522 = vdwg.mxu0
        %v523 = vsel %vm287, %v521, -inf
        %524 = vmax.xlane.f32.xlu0 %v523
        %v525 = vpop.xlane.xlu0 %524
        %v526 = vsub.f32 %v521, %v525
        %v527 = vmul.f32 %v526, 1.442695
        %v528 = vpow.pop %v527
        %v529 = vsel %vm287, %v528, 0.0
        %530 = vadd.xlane.f32.xlu0 %v529
        %v531 = vpop.xlane.xlu0 %530
        %v532 = vrcp.pop %v531
        %v533 = vmul.f32 %v528, %v532
        %534 = vrot.lane.b32.xlu0 %v282, 40
        %v535 = vpop.permute.xlu0 %534
        %v538 = vsel %vm287, %v533, 0
        %540 = vmatpush.msra.mxu0 0.0
        %541 = vmatpush.msra.mxu0 0.0
        %542 = vmatpush.msra.mxu0 0.0
        %543 = vmatpush.msra.mxu0 0.0
        %544 = vmatpush.msra.mxu0 0.0
        %545 = vmatpush.msra.mxu0 0.0
        %546 = vmatpush.msra.mxu0 0.0
        %547 = vmatpush.msra.mxu0 0.0
        %548 = vmatpush.msra.mxu0 0.0
        %549 = vmatpush.msra.mxu0 0.0
        %550 = vmatpush.msra.mxu0 0.0
        %551 = vmatpush.msra.mxu0 0.0
        %552 = vmatpush.msra.mxu0 0.0
        %553 = vmatpush.msra.mxu0 0.0
        %554 = vmatpush.msra.mxu0 0.0
        %555 = vmatpush.msra.mxu0 %v535
        %556 = vmatmul.f32.gmra.mxu0 %v538
        %v557 = vpop.f32.mrf.mxu0
        %v558 = vadd.f32 0.0, %v557
        %559 = vdwg.mxu0
        %561 = vrot.lane.b32.xlu0 %v558, 24
        %v562 = vpop.permute.xlu0 %561
        %vm564 = vcmask 261312
        %565 = vst.msk [vmem:[%s235] sm:$0xff] %vm564, %v562
        %v566 = vadd.f32 %v494, %v533
        %v567 = vmul.f32 %v566, 0.25
        %568 = vst.msk [vmem:[%s242] sm:$0xff] %vm287, %v567
        %s569 = sand.u32 %s102, 1
        %s570 = scalar_lea.sflag [#allocation4], %s569
        %s571 = sand.u32 %s102, 1
        %s572 = smul.addr %s571, 8
        %s573 = scalar_lea.vmem [#allocation7], %s572
        %s574 = sand.u32 %s128, 1
        %s575 = scalar_lea.sflag [#allocation9], %s574
        %s576 = sand.u32 %s128, 1
        %s577 = smul.addr %s576, 8
        %s578 = scalar_lea.vmem [#allocation8], %s577
        // Predicated region
        $region41: #{tpu_custom_call.1} parent=31 // pred_check
          %p579 = pneg %p112
        $region42: #{tpu_custom_call.1} parent=31 // pred_check_branch
          %581 = sbr.rel (%p579) target = $region44
        $region43: #{tpu_custom_call.1} parent=31 // pred_region
          %583 = vsyncadd %s570, 0
          %s584 = smul.addr %s26, 8
          %s585 = scalar_lea.hbm %s3, %s584
          %s587 = sshll.u32 %s573, 4
          %s588 = int_to_ptr.vmem [resolvable:$true] %s587
          %s589 = sshll.u32 %s585, 4
          %s590 = int_to_ptr.hbm [resolvable:$true] %s589
          %592 = dma.vmem_to_hbm [thread:$0]  %s588, 128, %s590, %s570
        $region44: #{tpu_custom_call.1} parent=31 // pred_fallthru
          _
        // Predicated region
        $region45: #{tpu_custom_call.1} parent=31 // pred_check
          %p593 = pneg %p138
        $region46: #{tpu_custom_call.1} parent=31 // pred_check_branch
          %595 = sbr.rel (%p593) target = $region48
        $region47: #{tpu_custom_call.1} parent=31 // pred_region
          %597 = vsyncadd %s575, 0
          %s598 = smul.addr %s26, 8
          %s599 = scalar_lea.hbm %s4, %s598
          %s601 = sshll.u32 %s578, 4
          %s602 = int_to_ptr.vmem [resolvable:$true] %s601
          %s603 = sshll.u32 %s599, 4
          %s604 = int_to_ptr.hbm [resolvable:$true] %s603
          %606 = dma.vmem_to_hbm [thread:$0]  %s602, 128, %s604, %s575
        $region48: #{tpu_custom_call.1} parent=31 // pred_fallthru
          _
      $region32: #{tpu_custom_call.1} parent=5 // pred_fallthru
        _
      %p607 = scmp.le.s32.totalorder 2, %s21
      // Predicated region
      $region49: #{tpu_custom_call.1} parent=5 // pred_check
        %p608 = pneg %p607
      $region50: #{tpu_custom_call.1} parent=5 // pred_check_branch
        %610 = sbr.rel (%p608) target = $region52
      $region51: #{tpu_custom_call.1} parent=5 // pred_region
        %s611 = ssub.s32 %s21, 2
        // Predicated region
        $region53: #{tpu_custom_call.1} parent=51 // pred_check
          %p612 = pneg %p118
        $region54: #{tpu_custom_call.1} parent=51 // pred_check_branch
          %614 = sbr.rel (%p612) target = $region56
        $region55: #{tpu_custom_call.1} parent=51 // pred_region
          %s615 = sand.u32 %s103, 1
          %s616 = scalar_lea.sflag [#allocation4], %s615
          %s617 = sand.u32 %s103, 1
          %s618 = smul.addr %s617, 8
          %s619 = scalar_lea.vmem [#allocation7], %s618
          %621 = dma.done %s616, 128
        $region56: #{tpu_custom_call.1} parent=51 // pred_fallthru
          _
        // Predicated region
        $region57: #{tpu_custom_call.1} parent=51 // pred_check
          %p622 = pneg %p144
        $region58: #{tpu_custom_call.1} parent=51 // pred_check_branch
          %624 = sbr.rel (%p622) target = $region60
        $region59: #{tpu_custom_call.1} parent=51 // pred_region
          %s625 = sand.u32 %s129, 1
          %s626 = scalar_lea.sflag [#allocation9], %s625
          %s627 = sand.u32 %s129, 1
          %s628 = smul.addr %s627, 8
          %s629 = scalar_lea.vmem [#allocation8], %s628
          %631 = dma.done %s626, 128
        $region60: #{tpu_custom_call.1} parent=51 // pred_fallthru
          _
      $region52: #{tpu_custom_call.1} parent=5 // pred_fallthru
        _
    $region6: #{tpu_custom_call.1} parent=1 // loop_footer
      %s25 = sadd.s32 1, %s21
    $region7: #{tpu_custom_call.1} parent=1 // loop_footer_branch
      %20 = sbr.rel target = $region3
    $region8: #{tpu_custom_call.1} parent=1 // loop_exit
      _
    %632 = vsyncpa [#allocation3], 1
    %s633 = scalar_lea.sflag [#allocation3], 1
    %634 = vsyncpa %s633, 1
    %635 = vsyncpa [#allocation6], 1
    %636 = vsyncpa [#allocation4], 1
    %s637 = scalar_lea.sflag [#allocation4], 1
    %638 = vsyncpa %s637, 1
    %639 = vsyncpa [#allocation9], 1
    %s640 = scalar_lea.sflag [#allocation9], 1
    %641 = vsyncpa %s640, 1

</llo_original>
